<compile_context>
chip_gen: v6e
topology: v6e:2x2x1
jax: 0.10.0
libtpu: 0.0.40
codegen_flags: <defaults>
</compile_context>

<pallas_src>
import jax
import jax.numpy as jnp
from jax.experimental import pallas as pl
from jax.experimental.pallas import tpu as pltpu


def _pick_group_size(N, C, D, target_k=256):
    """Pick tokens-per-group g (a divisor of N) for the block-diagonal matmul.

    Keeps the per-group contraction dim g*C near the MXU-native K (caps the
    zero-FLOP padding waste and the g^2*C*D weight block), while respecting
    Pallas lane constraints: unless a single group covers all of N, both g*C
    and g*D must be multiples of 128 so x / out blocks stay lane-dense.
    """
    best = N  # safe fallback: one group = full block-diagonal over N
    for g in range(1, N + 1):
        if N % g:
            continue
        if g * C > max(target_k, C):
            break
        if g == N or ((g * C) % 128 == 0 and (g * D) % 128 == 0):
            best = g
    return best


def _vmem_limit_bytes():
    """~75% of physical VMEM (96 MiB on 128-MiB parts, 48 MiB on v7x 64 MiB)."""
    try:
        cap = pltpu.get_tpu_info().vmem_capacity_bytes
    except Exception:
        cap = 64 * 1024 * 1024
    return max(32 * 1024 * 1024, min(int(cap * 0.75), 100 * 1024 * 1024))


def meta_linear(mk, x, w_gw, b_gw, w_gb, b_gb):
    """
    mk:   (B, N, M)     float32
    x:    (B, T, N, C)  float32   (PyTorch layout, consumed directly)
    w_gw: (M, C*D), b_gw: (C*D,)   weight-generator Linear (in,out layout)
    w_gb: (M, D),   b_gb: (D,)     bias-generator Linear
    returns (B, T, N, D) float32
    """
    B, N, M = mk.shape
    _, T, _, C = x.shape
    CD = w_gw.shape[1]
    D = w_gb.shape[1]
    assert CD == C * D
    NC, ND = N * C, N * D

    # ---- Generation hoisted to XLA (tiny: O(B*N*M*C*D) FLOPs, O(B*N*C*D) bytes).
    wflat = mk @ w_gw + b_gw                       # (B, N, C*D) f32
    bias = mk @ w_gb + b_gb                        # (B, N, D)   f32

    # Group tokens so the per-group contraction dim g*C stays near MXU-native K.
    g = _pick_group_size(N, C, D, target_k=256)
    G = N // g
    gC, gD = g * C, g * D

    # Per-group block-diagonal weights:
    #   wbd[b, h, p*C + c, m*D + d] = W[b, h*g + p, c, d]  if p == m else 0
    w5 = wflat.reshape(B, G, g, C, D)
    eye = jnp.eye(g, dtype=wflat.dtype)
    wbd = jnp.einsum('bhpcd,pm->bhpcmd', w5, eye).reshape(B, G, gC, gD)
    bias_g = bias.reshape(B, G, 1, gD)             # lane-dense per-group bias

    # Free (no-copy) trailing-dim collapse; no HBM transposes.
    x2 = x.reshape(B, T, NC)

    # ---- T tile from a VMEM budget (x + out double-buffered, + weight block).
    vmem_limit = _vmem_limit_bytes()
    budget = int(vmem_limit * 0.7) - 2 * (gC * gD + gD) * 4
    per_row = 2 * (gC + gD) * 4                    # x tile + out tile, 2-buffered
    t_max = max(8, budget // per_row)
    if T <= t_max:
        t_blk = T                                  # full extent (toy case: T=8)
    else:
        t_blk = max(8, min((t_max // 8) * 8, 4096))
    n_t = pl.cdiv(T, t_blk)

    def kernel(x_ref, wbd_ref, bias_ref, o_ref):
        # x_ref:   (1, t_blk, gC)   wbd_ref:  (1, 1, gC, gD)
        # bias_ref:(1, 1, 1, gD)    o_ref:    (1, t_blk, gD)
        # f32 MXU matmul with f32 accumulation: the kernel is HBM-bound, so the
        # extra MXU passes over bf16 are hidden under DMA on v6e/v7x.
        acc = jnp.dot(x_ref[0], wbd_ref[0, 0],
                      preferred_element_type=jnp.float32)      # (t_blk, gD)
        o_ref[0] = (acc + bias_ref[0, 0]).astype(o_ref.dtype)

    out2 = pl.pallas_call(
        kernel,
        out_shape=jax.ShapeDtypeStruct((B, T, ND), x.dtype),
        grid_spec=pltpu.PrefetchScalarGridSpec(
            num_scalar_prefetch=0,
            grid=(B, G, n_t),
            in_specs=[
                pl.BlockSpec((1, t_blk, gC), lambda b, h, t: (b, t, h)),
                pl.BlockSpec((1, 1, gC, gD), lambda b, h, t: (b, h, 0, 0)),
                pl.BlockSpec((1, 1, 1, gD), lambda b, h, t: (b, h, 0, 0)),
            ],
            out_specs=pl.BlockSpec((1, t_blk, gD), lambda b, h, t: (b, t, h)),
        ),
        compiler_params=pltpu.CompilerParams(
            # No reduction axis / no accumulator: every output block is written
            # exactly once, so all axes can be sharded across cores.
            dimension_semantics=("parallel", "parallel", "parallel"),
            vmem_limit_bytes=vmem_limit,
        ),
    )(x2, wbd, bias_g)

    return out2.reshape(B, T, N, D)                # free trailing-dim split


if __name__ == "__main__":
    # Small shapes consistent with the module's forward
    B, T, N = 2, 8, 4
    meta_dim, input_dim, output_dim = 32, 16, 32

    key = jax.random.PRNGKey(0)
    k_mk, k_x, k_w1, k_b1, k_w2, k_b2 = jax.random.split(key, 6)

    mk = jax.random.normal(k_mk, (B, N, meta_dim), dtype=jnp.float32)
    x = jax.random.normal(k_x, (B, T, N, input_dim), dtype=jnp.float32)

    # Deterministic synthetic parameters for the two nn.Linear layers
    # (stored as (in_features, out_features) so generation is mk @ W + b).
    w_gw = 0.1 * jax.random.normal(k_w1, (meta_dim, input_dim * output_dim),
                                   dtype=jnp.float32)
    b_gw = 0.1 * jax.random.normal(k_b1, (input_dim * output_dim,),
                                   dtype=jnp.float32)
    w_gb = 0.1 * jax.random.normal(k_w2, (meta_dim, output_dim),
                                   dtype=jnp.float32)
    b_gb = 0.1 * jax.random.normal(k_b2, (output_dim,), dtype=jnp.float32)

    out = meta_linear(mk, x, w_gw, b_gw, w_gb, b_gb)
    out = jax.block_until_ready(out)

    # Pure-JAX f32 reference (same math as the PyTorch forward).
    weight_ref = (mk @ w_gw + b_gw).reshape(B, N, input_dim, output_dim)
    bias_ref = (mk @ w_gb + b_gb).reshape(B, 1, N, output_dim)
    ref = jnp.einsum('btnc,bncd->btnd', x, weight_ref) + bias_ref

    assert out.shape == (B, T, N, output_dim)
    # Tighter than the bf16 version: kernel runs the x @ W matmul in f32 with
    # f32 accumulation; tolerance kept moderately conservative for MXU rounding.
    assert jnp.allclose(out, ref, atol=1e-2, rtol=1e-2)
    print("KERNEL_OK")
</pallas_src>

<mosaic_0001>
module attributes {stable_mosaic.version = 11 : i64} {
  func.func @kernel(%arg0: i32, %arg1: i32, %arg2: i32, %arg3: memref<1x8x64xf32, #tpu.memory_space<vmem>>, %arg4: memref<1x1x64x128xf32, #tpu.memory_space<vmem>>, %arg5: memref<1x1x1x128xf32, #tpu.memory_space<vmem>>, %arg6: memref<1x8x128xf32, #tpu.memory_space<vmem>>) attributes {dimension_semantics = [#tpu.dimension_semantics<parallel>, #tpu.dimension_semantics<parallel>, #tpu.dimension_semantics<parallel>], iteration_bounds = array<i64: 2, 1, 1>, scalar_prefetch = 0 : i64, scratch_operands = 0 : i64, tpu.core_type = #tpu.core_type<tc>, window_params = [{transform_indices = @transform_0, window_bounds = array<i64: 1, 8, 64>}, {transform_indices = @transform_1, window_bounds = array<i64: 1, 1, 64, 128>}, {transform_indices = @transform_2, window_bounds = array<i64: 1, 1, 1, 128>}, {transform_indices = @transform_3, window_bounds = array<i64: 1, 8, 128>}]} {
    %c0 = arith.constant 0 : index
    %c0_0 = arith.constant 0 : index
    %c0_1 = arith.constant 0 : index
    %0 = vector.load %arg3[%c0, %c0_0, %c0_1] : memref<1x8x64xf32, #tpu.memory_space<vmem>>, vector<1x8x64xf32>
    %1 = vector.shape_cast %0 : vector<1x8x64xf32> to vector<8x64xf32>
    %c0_2 = arith.constant 0 : index
    %c0_3 = arith.constant 0 : index
    %c0_4 = arith.constant 0 : index
    %c0_5 = arith.constant 0 : index
    %2 = vector.load %arg4[%c0_2, %c0_3, %c0_4, %c0_5] : memref<1x1x64x128xf32, #tpu.memory_space<vmem>>, vector<1x1x64x128xf32>
    %3 = vector.shape_cast %2 : vector<1x1x64x128xf32> to vector<64x128xf32>
    %cst = arith.constant dense<0.000000e+00> : vector<8x128xf32>
    %4 = tpu.matmul %1, %3, %cst {dimension_numbers = #tpu.dot_dimension_numbers<[1], [0], [0], [1], [0, 0, 1, 1], [], []>} : vector<8x64xf32>, vector<64x128xf32>, vector<8x128xf32> -> vector<8x128xf32>
    %c0_6 = arith.constant 0 : index
    %c0_7 = arith.constant 0 : index
    %c0_8 = arith.constant 0 : index
    %c0_9 = arith.constant 0 : index
    %5 = vector.load %arg5[%c0_6, %c0_7, %c0_8, %c0_9] : memref<1x1x1x128xf32, #tpu.memory_space<vmem>>, vector<1x1x1x128xf32>
    %6 = vector.shape_cast %5 : vector<1x1x1x128xf32> to vector<1x128xf32>
    %7 = vector.broadcast %6 : vector<1x128xf32> to vector<8x128xf32>
    %8 = arith.addf %4, %7 : vector<8x128xf32>
    %c0_10 = arith.constant 0 : index
    %c0_11 = arith.constant 0 : index
    %c0_12 = arith.constant 0 : index
    %9 = vector.load %arg6[%c0_10, %c0_11, %c0_12] : memref<1x8x128xf32, #tpu.memory_space<vmem>>, vector<1x8x128xf32>
    %10 = vector.shape_cast %9 : vector<1x8x128xf32> to vector<8x128xf32>
    %11 = vector.shape_cast %8 : vector<8x128xf32> to vector<1x8x128xf32>
    tpu.vector_store %arg6[%c0_10, %c0_11, %c0_12], %11 {strides = array<i32>} : memref<1x8x128xf32, #tpu.memory_space<vmem>>, vector<1x8x128xf32>,
    return
  }
  func.func @transform_0(%arg0: i32, %arg1: i32, %arg2: i32) -> (i32, i32, i32) {
    %c0_i32 = arith.constant 0 : i32
    return %arg0, %arg2, %arg1 : i32, i32, i32
  }
  func.func @transform_1(%arg0: i32, %arg1: i32, %arg2: i32) -> (i32, i32, i32, i32) {
    %c0_i32 = arith.constant 0 : i32
    %c0_i32_0 = arith.constant 0 : i32
    %c0_i32_1 = arith.constant 0 : i32
    return %arg0, %arg1, %c0_i32, %c0_i32_0 : i32, i32, i32, i32
  }
  func.func @transform_2(%arg0: i32, %arg1: i32, %arg2: i32) -> (i32, i32, i32, i32) {
    %c0_i32 = arith.constant 0 : i32
    %c0_i32_0 = arith.constant 0 : i32
    %c0_i32_1 = arith.constant 0 : i32
    return %arg0, %arg1, %c0_i32, %c0_i32_0 : i32, i32, i32, i32
  }
  func.func @transform_3(%arg0: i32, %arg1: i32, %arg2: i32) -> (i32, i32, i32) {
    %c0_i32 = arith.constant 0 : i32
    return %arg0, %arg2, %arg1 : i32, i32, i32
  }
}

</mosaic_0001>

<llo_original>
// kernel: tpu_custom_call.1
$region0: #{tpu_custom_call.1}
  #allocation0 [shape = 'u32[]', space=smem, size = 0x4, offset = 0x4, fixed_abs, tag = 'smem constant byte address 0x4 - core index']
  #allocation1 [shape = 'u32[144,128]{1,0:T(1,128)}', space=vmem, size = 0x12000, scoped, tag = 'internal scratch']
  %s0 = inlined_call_operand.hbm [shape: f32[2,8,64], index: 0, kind: input, shape index: {}]
  %s1 = inlined_call_operand.hbm [shape: f32[2,1,64,128], index: 1, kind: input, shape index: {}]
  %s2 = inlined_call_operand.vmem [shape: f32[2,1,1,128], index: 2, kind: input, shape index: {}]
  %s3 = inlined_call_operand.hbm [shape: f32[2,8,128], index: 3, kind: output, shape index: {}]
  %s4 = sld [smem:[#allocation0]]
  $region53: #{tpu_custom_call.1} parent=0
    _
  %s6 = ssub.s32 1, %s4
  %s7 = scalar_select 0, %s6, %s4
  $region1: #{tpu_custom_call.1} parent=0
    #allocation2 [shape = 'u8[8192]{0}', space=vmem, size = 0x2000, scoped, tag = 'input window, operand 0']
    #allocation3 [shape = 's32[2]{0}', space=sflag, size = 0x8, scoped, tag = 'scoped memory for tpu_custom_call.1']
    #allocation4 [shape = 's32[2]{0}', space=sflag, size = 0x8, scoped, tag = 'scoped memory for tpu_custom_call.1']
    #allocation5 [shape = 'u8[65536]{0}', space=vmem, size = 0x10000, scoped, tag = 'input window, operand 1']
    #allocation6 [shape = 's32[2]{0}', space=sflag, size = 0x8, scoped, tag = 'scoped memory for tpu_custom_call.1']
    #allocation7 [shape = 'u8[8192]{0}', space=vmem, size = 0x2000, scoped, tag = 'output window, operand 0']
    %8 = vsyncpa [#allocation3], 0
    %s9 = scalar_lea.sflag [#allocation3], 1
    %10 = vsyncpa %s9, 0
    %11 = vsyncpa [#allocation6], 0
    %s12 = scalar_lea.sflag [#allocation6], 1
    %13 = vsyncpa %s12, 0
    %14 = vsyncpa [#allocation4], 0
    %s15 = scalar_lea.sflag [#allocation4], 1
    %16 = vsyncpa %s15, 0
    loop: start=0, step=1, limit=4
    $region2: #{tpu_custom_call.1} parent=1 // loop_pre_header
      _
    $region3: #{tpu_custom_call.1} parent=1 // loop_header
      %s18 = sphi 0, %s22
      %p19 = scmp.ge.s32.totalorder %s18, 4
      %s25 = sphi 0, %s44
      %s26 = sphi 0, %s40
      %s27 = sphi 0, %s36
      %s28 = sphi 0, %s25
      %s29 = sphi 0, %s26
      %s30 = sphi 0, %s27
      %s31 = sphi 0, %s28
      %s32 = sphi 0, %s29
      %s33 = sphi 0, %s30
      %s51 = sphi 0, %s53
      %s54 = sphi 0, %s51
      %s55 = sphi 0, %s54
      %s71 = sphi 0, %s55
      %s79 = sphi 0, %s81
      %s82 = sphi 0, %s79
      %s83 = sphi 0, %s82
      %s99 = sphi 0, %s83
      %s107 = sphi 0, %s109
      %s110 = sphi 0, %s107
      %s111 = sphi 0, %s110
      %s127 = sphi 0, %s111
      %s137 = sphi 0, %s139
      %s140 = sphi 0, %s137
      %s141 = sphi 0, %s140
      %s157 = sphi 0, %s141
    $region4: #{tpu_custom_call.1} parent=1 // loop_header_branch
      %21 = sbr.rel (%p19) target = $region8
    $region5: #{tpu_custom_call.1} parent=1 // loop_body
      %s23 = ssub.s32 %s18, 1
      %s24 = ssub.s32 %s18, 2
      %s34 = sadd.s32 1, %s27
      %p35 = scmp.ge.s32.totalorder %s34, 1
      %s36 = scalar_select %p35, 0, %s34
      %s37 = sadd.s32 1, %s26
      %s38 = scalar_select %p35, %s37, %s26
      %p39 = scmp.ge.s32.totalorder %s38, 1
      %s40 = scalar_select %p39, 0, %s38
      %s41 = sadd.s32 1, %s25
      %s42 = scalar_select %p39, %s41, %s25
      %p43 = scmp.ge.s32.totalorder %s42, 2
      %s44 = scalar_select %p43, 0, %s42
      %s45 = ssub.s32 %s25, %s44
      %s46 = ssub.s32 %s27, %s36
      %s47 = sor.u32 %s45, %s46
      %s48 = ssub.s32 %s26, %s40
      %s49 = sor.u32 %s47, %s48
      %p50 = scmp.eq.s32.totalorder %s49, 0
      %s52 = sadd.s32 %s51, 1
      %s53 = scalar_select %p50, %s51, %s52
      %p56 = pneg %p50
      %p57 = scmp.eq.s32.totalorder %s18, 1
      %p58 = por %p56, %p57
      %p59 = scmp.ne.s32.totalorder %s51, %s54
      %p60 = scmp.eq.s32.totalorder %s18, 0
      %p61 = por %p59, %p60
      %p62 = scmp.ne.s32.totalorder %s51, %s54
      %p63 = scmp.eq.s32.totalorder %s23, 1
      %p64 = por %p62, %p63
      %p65 = scmp.ne.s32.totalorder %s54, %s55
      %p66 = scmp.eq.s32.totalorder %s23, 0
      %p67 = por %p65, %p66
      %p68 = scmp.ne.s32.totalorder %s54, %s55
      %p69 = scmp.eq.s32.totalorder %s24, 1
      %p70 = por %p68, %p69
      %p72 = scmp.ne.s32.totalorder %s55, %s71
      %p73 = scmp.eq.s32.totalorder %s24, 0
      %p74 = por %p72, %p73
      %s75 = ssub.s32 %s25, %s44
      %s76 = ssub.s32 %s26, %s40
      %s77 = sor.u32 %s75, %s76
      %p78 = scmp.eq.s32.totalorder %s77, 0
      %s80 = sadd.s32 %s79, 1
      %s81 = scalar_select %p78, %s79, %s80
      %p84 = pneg %p78
      %p85 = scmp.eq.s32.totalorder %s18, 1
      %p86 = por %p84, %p85
      %p87 = scmp.ne.s32.totalorder %s79, %s82
      %p88 = scmp.eq.s32.totalorder %s18, 0
      %p89 = por %p87, %p88
      %p90 = scmp.ne.s32.totalorder %s79, %s82
      %p91 = scmp.eq.s32.totalorder %s23, 1
      %p92 = por %p90, %p91
      %p93 = scmp.ne.s32.totalorder %s82, %s83
      %p94 = scmp.eq.s32.totalorder %s23, 0
      %p95 = por %p93, %p94
      %p96 = scmp.ne.s32.totalorder %s82, %s83
      %p97 = scmp.eq.s32.totalorder %s24, 1
      %p98 = por %p96, %p97
      %p100 = scmp.ne.s32.totalorder %s83, %s99
      %p101 = scmp.eq.s32.totalorder %s24, 0
      %p102 = por %p100, %p101
      %s103 = ssub.s32 %s25, %s44
      %s104 = ssub.s32 %s26, %s40
      %s105 = sor.u32 %s103, %s104
      %p106 = scmp.eq.s32.totalorder %s105, 0
      %s108 = sadd.s32 %s107, 1
      %s109 = scalar_select %p106, %s107, %s108
      %p112 = pneg %p106
      %p113 = scmp.eq.s32.totalorder %s18, 1
      %p114 = por %p112, %p113
      %p115 = scmp.ne.s32.totalorder %s107, %s110
      %p116 = scmp.eq.s32.totalorder %s18, 0
      %p117 = por %p115, %p116
      %p118 = scmp.ne.s32.totalorder %s107, %s110
      %p119 = scmp.eq.s32.totalorder %s23, 1
      %p120 = por %p118, %p119
      %p121 = scmp.ne.s32.totalorder %s110, %s111
      %p122 = scmp.eq.s32.totalorder %s23, 0
      %p123 = por %p121, %p122
      %p124 = scmp.ne.s32.totalorder %s110, %s111
      %p125 = scmp.eq.s32.totalorder %s24, 1
      %p126 = por %p124, %p125
      %p128 = scmp.ne.s32.totalorder %s111, %s127
      %p129 = scmp.eq.s32.totalorder %s24, 0
      %p130 = por %p128, %p129
      %s131 = ssub.s32 %s25, %s44
      %s132 = ssub.s32 %s27, %s36
      %s133 = sor.u32 %s131, %s132
      %s134 = ssub.s32 %s26, %s40
      %s135 = sor.u32 %s133, %s134
      %p136 = scmp.eq.s32.totalorder %s135, 0
      %s138 = sadd.s32 %s137, 1
      %s139 = scalar_select %p136, %s137, %s138
      %p142 = pneg %p136
      %p143 = scmp.eq.s32.totalorder %s18, 1
      %p144 = por %p142, %p143
      %p145 = scmp.ne.s32.totalorder %s137, %s140
      %p146 = scmp.eq.s32.totalorder %s18, 0
      %p147 = por %p145, %p146
      %p148 = scmp.ne.s32.totalorder %s137, %s140
      %p149 = scmp.eq.s32.totalorder %s23, 1
      %p150 = por %p148, %p149
      %p151 = scmp.ne.s32.totalorder %s140, %s141
      %p152 = scmp.eq.s32.totalorder %s23, 0
      %p153 = por %p151, %p152
      %p154 = scmp.ne.s32.totalorder %s140, %s141
      %p155 = scmp.eq.s32.totalorder %s24, 1
      %p156 = por %p154, %p155
      %p158 = scmp.ne.s32.totalorder %s141, %s157
      %p159 = scmp.eq.s32.totalorder %s24, 0
      %p160 = por %p158, %p159
      %p161 = scmp.le.s32.totalorder 1, %s18
      %p162 = scmp.lt.s32.totalorder %s18, 3
      %p163 = pnand %p161, %p162
      %p164 = pneg %p163
      // Predicated region
      $region9: #{tpu_custom_call.1} parent=5 // pred_check
        _
      $region10: #{tpu_custom_call.1} parent=5 // pred_check_branch
        %166 = sbr.rel (%p163) target = $region12
      $region11: #{tpu_custom_call.1} parent=5 // pred_region
        %s167 = ssub.s32 %s18, 1
      $region12: #{tpu_custom_call.1} parent=5 // pred_fallthru
        _
      %p168 = scmp.lt.s32.totalorder %s18, 2
      // Predicated region
      $region13: #{tpu_custom_call.1} parent=5 // pred_check
        %p169 = pneg %p168
      $region14: #{tpu_custom_call.1} parent=5 // pred_check_branch
        %171 = sbr.rel (%p169) target = $region16
      $region15: #{tpu_custom_call.1} parent=5 // pred_region
        // Predicated region
        $region17: #{tpu_custom_call.1} parent=15 // pred_check
          %p172 = pneg %p61
        $region18: #{tpu_custom_call.1} parent=15 // pred_check_branch
          %174 = sbr.rel (%p172) target = $region20
        $region19: #{tpu_custom_call.1} parent=15 // pred_region
          %s175 = sand.u32 %s51, 1
          %s176 = scalar_lea.sflag [#allocation3], %s175
          %s177 = sand.u32 %s51, 1
          %s178 = smul.addr %s177, 8
          %s179 = scalar_lea.vmem [#allocation2], %s178
          %s181 = ssub.s32 128, 128
          %182 = vsyncadd %s176, %s181
          %s183 = sadd.s32 %s26, %s27
          %s184 = sadd.s32 %s183, %s25
          %s185 = smul.addr %s184, 128
          %s186 = scalar_lea.hbm %s0, %s185
          %s188 = sshll.u32 %s179, 4
          %s189 = int_to_ptr.vmem [resolvable:$true] %s188
          %191 = dma.hbm_to_vmem [thread:$0]  %s186, 128, %s189, %s176
        $region20: #{tpu_custom_call.1} parent=15 // pred_fallthru
          _
        // Predicated region
        $region21: #{tpu_custom_call.1} parent=15 // pred_check
          %p192 = pneg %p89
        $region22: #{tpu_custom_call.1} parent=15 // pred_check_branch
          %194 = sbr.rel (%p192) target = $region24
        $region23: #{tpu_custom_call.1} parent=15 // pred_region
          %s195 = sand.u32 %s79, 1
          %s196 = scalar_lea.sflag [#allocation6], %s195
          %s197 = sand.u32 %s79, 1
          %s198 = smul.addr %s197, 64
          %s199 = scalar_lea.vmem [#allocation5], %s198
          %s201 = ssub.s32 1024, 1024
          %202 = vsyncadd %s196, %s201
          %s203 = smul.addr %s26, 8
          %s204 = smul.addr %s25, 8
          %s205 = sadd.s32 %s203, %s204
          %s206 = smul.addr %s205, 128
          %s207 = scalar_lea.hbm %s1, %s206
          %s208 = sshll.u32 %s199, 4
          %s209 = int_to_ptr.vmem [resolvable:$true] %s208
          %214 = dma.hbm_to_vmem [thread:$0]  %s207, 1024, %s209, %s196, 128, 128, 8
        $region24: #{tpu_custom_call.1} parent=15 // pred_fallthru
          _
        // Predicated region
        $region25: #{tpu_custom_call.1} parent=15 // pred_check
          %p215 = pneg %p117
        $region26: #{tpu_custom_call.1} parent=15 // pred_check_branch
          %217 = sbr.rel (%p215) target = $region28
        $region27: #{tpu_custom_call.1} parent=15 // pred_region
          %p218 = scmp.lt.s32.totalorder %s25, 1
          %s219 = scalar_select %p218, %s25, 1
          %p220 = scmp.lt.s32.totalorder %s26, 0
          %s221 = scalar_select %p220, %s26, 0
          %s222 = sadd.s32 %s221, %s219
          %s223 = scalar_lea.vmem %s2, %s222
        $region28: #{tpu_custom_call.1} parent=15 // pred_fallthru
          _
      $region16: #{tpu_custom_call.1} parent=5 // pred_fallthru
        _
      %p224 = scmp.le.s32.totalorder 1, %s18
      %p225 = scmp.lt.s32.totalorder %s18, 3
      %p226 = pnand %p224, %p225
      %p227 = pneg %p226
      // Predicated region
      $region29: #{tpu_custom_call.1} parent=5 // pred_check
        _
      $region30: #{tpu_custom_call.1} parent=5 // pred_check_branch
        %229 = sbr.rel (%p226) target = $region32
      $region31: #{tpu_custom_call.1} parent=5 // pred_region
        %s230 = ssub.s32 %s18, 1
        %s231 = sand.u32 %s54, 1
        %s232 = scalar_lea.sflag [#allocation3], %s231
        %s233 = sand.u32 %s54, 1
        %s234 = smul.addr %s233, 8
        %s235 = scalar_lea.vmem [#allocation2], %s234
        // Predicated region
        $region33: #{tpu_custom_call.1} parent=31 // pred_check
          %p236 = pneg %p67
        $region34: #{tpu_custom_call.1} parent=31 // pred_check_branch
          %238 = sbr.rel (%p236) target = $region36
        $region35: #{tpu_custom_call.1} parent=31 // pred_region
          %239 = dma.done %s232, 128
        $region36: #{tpu_custom_call.1} parent=31 // pred_fallthru
          _
        %s240 = sand.u32 %s82, 1
        %s241 = scalar_lea.sflag [#allocation6], %s240
        %s242 = sand.u32 %s82, 1
        %s243 = smul.addr %s242, 64
        %s244 = scalar_lea.vmem [#allocation5], %s243
        // Predicated region
        $region37: #{tpu_custom_call.1} parent=31 // pred_check
          %p245 = pneg %p95
        $region38: #{tpu_custom_call.1} parent=31 // pred_check_branch
          %247 = sbr.rel (%p245) target = $region40
        $region39: #{tpu_custom_call.1} parent=31 // pred_region
          %248 = dma.done %s241, 1024
        $region40: #{tpu_custom_call.1} parent=31 // pred_fallthru
          _
        %s249 = sand.u32 %s54, 1
        %s250 = scalar_lea.sflag [#allocation3], %s249
        %s251 = sand.u32 %s54, 1
        %s252 = smul.addr %s251, 8
        %s253 = scalar_lea.vmem [#allocation2], %s252
        %p254 = pneg %p67
        %p255 = pneg %p64
        %s256 = sand.u32 %s82, 1
        %s257 = scalar_lea.sflag [#allocation6], %s256
        %s258 = sand.u32 %s82, 1
        %s259 = smul.addr %s258, 64
        %s260 = scalar_lea.vmem [#allocation5], %s259
        %p261 = pneg %p95
        %p262 = pneg %p92
        %p263 = scmp.lt.s32.totalorder %s28, 1
        %s264 = scalar_select %p263, %s28, 1
        %p265 = scmp.lt.s32.totalorder %s29, 0
        %s266 = scalar_select %p265, %s29, 0
        %s267 = sadd.s32 %s266, %s264
        %s268 = scalar_lea.vmem %s2, %s267
        %p269 = pneg %p123
        %p270 = pneg %p120
        %p271 = pneg %p153
        %p272 = pneg %p150
        %s273 = sand.u32 %s140, 1
        %s274 = scalar_lea.sflag [#allocation4], %s273
        %s275 = sand.u32 %s140, 1
        %s276 = smul.addr %s275, 8
        %s277 = scalar_lea.vmem [#allocation7], %s276
        %p278 = scmp.lt.s32.totalorder %s28, 1
        %s279 = scalar_select %p278, %s28, 1
        %p280 = scmp.lt.s32.totalorder %s29, 0
        %s281 = scalar_select %p280, %s29, 0
        %s282 = sadd.s32 %s281, %s279
        %s283 = scalar_lea.vmem %s2, %s282
        %v284 = vld [vmem:[%s235] sm:$0xff]
        %v285 = vld [vmem:[%s244] sm:$0xff]
        %v286 = vld [vmem:[%s244 + $0x8] sm:$0xff]
        %v287 = vld [vmem:[%s244 + $0x10] sm:$0xff]
        %v288 = vld [vmem:[%s244 + $0x18] sm:$0xff]
        %v289 = vld [vmem:[%s244 + $0x20] sm:$0xff]
        %v290 = vld [vmem:[%s244 + $0x28] sm:$0xff]
        %v291 = vld [vmem:[%s244 + $0x30] sm:$0xff]
        %v292 = vld [vmem:[%s244 + $0x38] sm:$0xff]
        %v293 = vld [vmem:[%s283] sm:$0x1]
        %v295 = vlaneseq
        %v296 = vshrl.u32 %v295, 7
        %v297 = vsub.s32 0, %v296
        %v298 = vrot.slane %v293, %v297
        %vm300 = vcmask 523264
        %v302 = vsel %vm300, %v284, 0
        %304 = vmatprep.subr.mxu0 0.0
        %305 = vmatpush1.msra.mxu0 0.0
        %306 = vmatprep.subr.mxu0 0.0
        %307 = vmatpush1.msra.mxu0 0.0
        %308 = vmatprep.subr.mxu0 0.0
        %309 = vmatpush1.msra.mxu0 0.0
        %310 = vmatprep.subr.mxu0 0.0
        %311 = vmatpush1.msra.mxu0 0.0
        %312 = vmatprep.subr.mxu0 0.0
        %313 = vmatpush1.msra.mxu0 0.0
        %314 = vmatprep.subr.mxu0 0.0
        %315 = vmatpush1.msra.mxu0 0.0
        %316 = vmatprep.subr.mxu0 0.0
        %317 = vmatpush1.msra.mxu0 0.0
        %318 = vmatprep.subr.mxu0 0.0
        %319 = vmatpush1.msra.mxu0 0.0
        %320 = vmatprep.subr.mxu0 0.0
        %321 = vmatpush1.msra.mxu0 %v292
        %322 = vmatprep.subr.mxu0 0.0
        %323 = vmatpush1.msra.mxu0 %v291
        %324 = vmatprep.subr.mxu0 0.0
        %325 = vmatpush1.msra.mxu0 %v290
        %326 = vmatprep.subr.mxu0 0.0
        %327 = vmatpush1.msra.mxu0 %v289
        %328 = vmatprep.subr.mxu0 0.0
        %329 = vmatpush1.msra.mxu0 %v288
        %330 = vmatprep.subr.mxu0 0.0
        %331 = vmatpush1.msra.mxu0 %v287
        %332 = vmatprep.subr.mxu0 0.0
        %333 = vmatpush1.msra.mxu0 %v286
        %334 = vmatprep.subr.mxu0 0.0
        %335 = vmatpush1.msra.mxu0 %v285
        %336 = vmatprep.subr.mxu0 0.0
        %337 = vmatpush2.msra.mxu0 0.0
        %338 = vmatprep.subr.mxu0 0.0
        %339 = vmatpush2.msra.mxu0 0.0
        %340 = vmatprep.subr.mxu0 0.0
        %341 = vmatpush2.msra.mxu0 0.0
        %342 = vmatprep.subr.mxu0 0.0
        %343 = vmatpush2.msra.mxu0 0.0
        %344 = vmatprep.subr.mxu0 0.0
        %345 = vmatpush2.msra.mxu0 0.0
        %346 = vmatprep.subr.mxu0 0.0
        %347 = vmatpush2.msra.mxu0 0.0
        %348 = vmatprep.subr.mxu0 0.0
        %349 = vmatpush2.msra.mxu0 0.0
        %350 = vmatprep.subr.mxu0 0.0
        %351 = vmatpush2.msra.mxu0 0.0
        %352 = vmatprep.subr.mxu0 0.0
        %353 = vmatpush2.msra.mxu0 0.0
        %354 = vmatprep.subr.mxu0 0.0
        %355 = vmatpush2.msra.mxu0 0.0
        %356 = vmatprep.subr.mxu0 0.0
        %357 = vmatpush2.msra.mxu0 0.0
        %358 = vmatprep.subr.mxu0 0.0
        %359 = vmatpush2.msra.mxu0 0.0
        %360 = vmatprep.subr.mxu0 0.0
        %361 = vmatpush2.msra.mxu0 0.0
        %362 = vmatprep.subr.mxu0 0.0
        %363 = vmatpush2.msra.mxu0 0.0
        %364 = vmatprep.subr.mxu0 0.0
        %365 = vmatpush2.msra.mxu0 0.0
        %366 = vmatprep.subr.mxu0 0.0
        %367 = vmatpush2.msra.mxu0 0.0
        %368 = vmatprep.mubr.f32.mxu0 0.0
        %369 = vmatmul.mubr.f32.gmra.mxu0 %v302
        %v370 = vpop.f32.mrf.mxu0
        %v371 = vadd.f32 %v298, %v370
        %v372 = vpop.f32.mrf.mxu0
        %373 = vdwg.mxu0
        %374 = vst [vmem:[%s277] sm:$0xff] %v371
        %s375 = sand.u32 %s140, 1
        %s376 = scalar_lea.sflag [#allocation4], %s375
        %s377 = sand.u32 %s140, 1
        %s378 = smul.addr %s377, 8
        %s379 = scalar_lea.vmem [#allocation7], %s378
        // Predicated region
        $region41: #{tpu_custom_call.1} parent=31 // pred_check
          %p380 = pneg %p150
        $region42: #{tpu_custom_call.1} parent=31 // pred_check_branch
          %382 = sbr.rel (%p380) target = $region44
        $region43: #{tpu_custom_call.1} parent=31 // pred_region
          %s384 = ssub.s32 128, 128
          %385 = vsyncadd %s376, %s384
          %s386 = sadd.s32 %s29, %s30
          %s387 = sadd.s32 %s386, %s28
          %s388 = smul.addr %s387, 128
          %s389 = scalar_lea.hbm %s3, %s388
          %s391 = sshll.u32 %s379, 4
          %s392 = int_to_ptr.vmem [resolvable:$true] %s391
          %394 = dma.vmem_to_hbm [thread:$0]  %s392, 128, %s389, %s376
        $region44: #{tpu_custom_call.1} parent=31 // pred_fallthru
          _
      $region32: #{tpu_custom_call.1} parent=5 // pred_fallthru
        _
      %p395 = scmp.le.s32.totalorder 2, %s18
      // Predicated region
      $region45: #{tpu_custom_call.1} parent=5 // pred_check
        %p396 = pneg %p395
      $region46: #{tpu_custom_call.1} parent=5 // pred_check_branch
        %398 = sbr.rel (%p396) target = $region48
      $region47: #{tpu_custom_call.1} parent=5 // pred_region
        %s399 = ssub.s32 %s18, 2
        // Predicated region
        $region49: #{tpu_custom_call.1} parent=47 // pred_check
          %p400 = pneg %p156
        $region50: #{tpu_custom_call.1} parent=47 // pred_check_branch
          %402 = sbr.rel (%p400) target = $region52
        $region51: #{tpu_custom_call.1} parent=47 // pred_region
          %s403 = sand.u32 %s141, 1
          %s404 = scalar_lea.sflag [#allocation4], %s403
          %s405 = sand.u32 %s141, 1
          %s406 = smul.addr %s405, 8
          %s407 = scalar_lea.vmem [#allocation7], %s406
          %408 = dma.done %s404, 128
        $region52: #{tpu_custom_call.1} parent=47 // pred_fallthru
          _
      $region48: #{tpu_custom_call.1} parent=5 // pred_fallthru
        _
    $region6: #{tpu_custom_call.1} parent=1 // loop_footer
      %s22 = sadd.s32 1, %s18
    $region7: #{tpu_custom_call.1} parent=1 // loop_footer_branch
      %17 = sbr.rel target = $region3
    $region8: #{tpu_custom_call.1} parent=1 // loop_exit
      _
    %409 = vsyncpa [#allocation3], 1
    %s410 = scalar_lea.sflag [#allocation3], 1
    %411 = vsyncpa %s410, 1
    %412 = vsyncpa [#allocation6], 1
    %s413 = scalar_lea.sflag [#allocation6], 1
    %414 = vsyncpa %s413, 1
    %415 = vsyncpa [#allocation4], 1
    %s416 = scalar_lea.sflag [#allocation4], 1
    %417 = vsyncpa %s416, 1

</llo_original>
